<compile_context>
chip_gen: v5e
topology: v5e:2x2
jax: 0.10.0
libtpu: 0.0.40
codegen_flags: <defaults>
</compile_context>

<pallas_src>
import jax
import jax.numpy as jnp
from jax.experimental import pallas as pl
from jax.experimental.pallas import tpu as pltpu


def _round_up(x, m):
    return ((x + m - 1) // m) * m


def _round_down(x, m):
    return max(m, (x // m) * m)


def _shrink_tile(t):
    """Halve a tile size, preferring 256 granularity (v6e/v7x 256x256 MXU)."""
    if t > 512:
        return _round_down(t // 2, 256)
    if t > 256:
        return 256
    if t > 128:
        return 128
    return _round_down(t // 2, 8)


# ---------------------------------------------------------------------------
# Kernels
# ---------------------------------------------------------------------------
def _embed_kernel(x_ref, w_ref, b_ref, o_ref):
    """o = relu(x @ w + b); full-K panels (no reduction axis in the grid)."""
    y = jnp.dot(x_ref[...], w_ref[...], preferred_element_type=jnp.float32)
    y = y + b_ref[...]                      # bias is f32, broadcast over rows
    o_ref[...] = jnp.maximum(y, 0.0).astype(o_ref.dtype)


def _embed_kernel_ksplit(x_ref, w_ref, b_ref, o_ref, acc_ref):
    """K-tiled variant with an f32 VMEM accumulator."""
    k = pl.program_id(2)

    @pl.when(k == 0)
    def _():
        acc_ref[...] = jnp.zeros_like(acc_ref)

    acc_ref[...] += jnp.dot(x_ref[...], w_ref[...],
                            preferred_element_type=jnp.float32)

    @pl.when(k == pl.num_programs(2) - 1)
    def _():
        y = acc_ref[...] + b_ref[...]
        o_ref[...] = jnp.maximum(y, 0.0).astype(o_ref.dtype)


# ---------------------------------------------------------------------------
# Wrapper
# ---------------------------------------------------------------------------
def visual_embedding(inputs, weight, bias, *, tm=512, tn=None, tk=None,
                     matmul_dtype=None, out_dtype=None,
                     vmem_limit_bytes=None, force_mode="auto"):
    """relu(inputs @ weight + bias); dropout is identity (eval mode).

    inputs: (..., d_visual)
    weight: (d_visual, d_model)   # transpose of torch nn.Linear.weight
    bias:   (d_model,)
    matmul_dtype: e.g. jnp.bfloat16 -> operands cast in the wrapper (halves
        DMA bytes, native MXU dtype); accumulation stays f32. Changes numerics
        vs the f32 torch reference (~1e-2 relative), so it is opt-in.
    out_dtype: output dtype (default: inputs.dtype); bf16 halves store bytes.
    force_mode: "auto" | "resident" | "stream" | "ksplit" (testing knob).
    """
    d_visual, d_model = weight.shape
    lead_shape = inputs.shape[:-1]
    out_dtype = out_dtype or inputs.dtype

    x2d = inputs.reshape(-1, d_visual)
    m = x2d.shape[0]

    # Wrapper-side cast (review: do NOT cast inside the kernel).
    if matmul_dtype is not None:
        x2d = x2d.astype(matmul_dtype)
        weight = weight.astype(matmul_dtype)
    bias = bias.astype(jnp.float32)

    # Lane-dense weight/bias: pad d_model up to a multiple of 128 (cheap,
    # parameter-sized). The OUTPUT is emitted at (m, d_model) directly; only
    # the last N block uses a masked store.
    n_pad = _round_up(d_model, 128)
    if n_pad != d_model:
        weight = jnp.pad(weight, ((0, 0), (0, n_pad - d_model)))
        bias = jnp.pad(bias, (0, n_pad - d_model))
    b2d = bias.reshape(1, n_pad)

    # Generation-aware VMEM limit (v7x has only 64 MiB per TC).
    if vmem_limit_bytes is None:
        try:
            cap = pltpu.get_tpu_info().vmem_capacity_bytes
        except Exception:
            cap = 128 * 1024 * 1024
        vmem_limit_bytes = min(64 * 1024 * 1024, int(0.75 * cap))
    budget = int(0.6 * vmem_limit_bytes)

    x_item = jnp.dtype(x2d.dtype).itemsize
    w_item = jnp.dtype(weight.dtype).itemsize
    o_item = jnp.dtype(out_dtype).itemsize

    # Row tile: sublane aligned, clamped to the problem size.
    tm = _round_down(min(tm, _round_up(m, 8)), 8)

    # ---- mode selection ---------------------------------------------------
    if force_mode == "ksplit" or tk is not None:
        mode = "ksplit"
    elif force_mode in ("resident", "stream"):
        mode = force_mode
    else:
        mode = None  # auto

    def _resident_bytes(tm_):
        # x tile + full weight + bias + out tile, double buffered.
        return 2 * (x_item * tm_ * d_visual + w_item * d_visual * n_pad
                    + 4 * n_pad + o_item * tm_ * n_pad)

    tm_res = tm
    while _resident_bytes(tm_res) > budget and tm_res > 128:
        tm_res = _shrink_tile(tm_res)

    if mode is None and _resident_bytes(tm_res) <= budget:
        mode = "resident"
    if mode == "resident":
        tm = tm_res

    if mode in (None, "stream"):
        tn_s = _round_down(min(tn or 512, n_pad), 128)
        tm_s = tm

        def _stream_bytes(tm_, tn_):
            return 2 * (x_item * tm_ * d_visual + w_item * d_visual * tn_
                        + 4 * tn_ + o_item * tm_ * tn_)

        while _stream_bytes(tm_s, tn_s) > budget:
            if tm_s > 256:                 # keep 256-wide tiles as long as possible
                tm_s = _shrink_tile(tm_s)
            elif tn_s > 256:
                tn_s = _shrink_tile(tn_s)
            elif tm_s > 128:
                tm_s = 128
            elif tn_s > 128:
                tn_s = 128
            else:
                break
        if mode == "stream" or _stream_bytes(tm_s, tn_s) <= budget:
            mode = "stream"
            tm, tn = tm_s, tn_s
        else:
            mode = "ksplit"                # even 128x128 full-K panels overflow

    k_pad = d_visual
    if mode == "ksplit":
        tn = _round_down(min(tn or 512, n_pad), 128)
        if tk is None:
            tk = 512
        tk = _round_down(min(tk, _round_up(d_visual, 128)), 128)

        def _ksplit_bytes(tm_, tn_, tk_):
            return (2 * (x_item * tm_ * tk_ + w_item * tk_ * tn_
                         + 4 * tn_ + o_item * tm_ * tn_)
                    + 4 * tm_ * tn_)       # f32 accumulator scratch (single)

        while _ksplit_bytes(tm, tn, tk) > budget and (tk > 128 or tm > 128 or tn > 128):
            if tk > 128:
                tk = _shrink_tile(tk)
            elif tm > 128:
                tm = _shrink_tile(tm)
            else:
                tn = _shrink_tile(tn)

        # Zero-pad K to a multiple of tk (zeros do not change the matmul).
        k_pad = _round_up(d_visual, tk)
        if k_pad != d_visual:
            x2d = jnp.pad(x2d, ((0, 0), (0, k_pad - d_visual)))
            weight = jnp.pad(weight, ((0, k_pad - d_visual), (0, 0)))

    # ---- grid / specs -------------------------------------------------------
    scratch = []
    if mode == "resident":
        # Weight + bias fetched from HBM exactly once (constant block index).
        grid = (pl.cdiv(m, tm),)
        in_specs = [
            pl.BlockSpec((tm, d_visual), lambda i: (i, 0)),
            pl.BlockSpec((d_visual, n_pad), lambda i: (0, 0)),
            pl.BlockSpec((1, n_pad), lambda i: (0, 0)),
        ]
        out_specs = pl.BlockSpec((tm, n_pad), lambda i: (i, 0))
        dim_sem = ("parallel",)            # v7x: 2 TCs split row blocks
        kernel = _embed_kernel
    elif mode == "stream":
        gm, gn = pl.cdiv(m, tm), pl.cdiv(n_pad, tn)
        # Pick the axis order that minimizes re-streamed HBM bytes.
        traffic_stream_w = x_item * m * d_visual + w_item * gm * d_visual * n_pad
        traffic_stream_x = w_item * d_visual * n_pad + x_item * gn * m * d_visual
        if traffic_stream_w <= traffic_stream_x:
            grid = (gm, gn)                # i outer: x tile resident, weight streams
            in_specs = [
                pl.BlockSpec((tm, d_visual), lambda i, j: (i, 0)),
                pl.BlockSpec((d_visual, tn), lambda i, j: (0, j)),
                pl.BlockSpec((1, tn), lambda i, j: (0, j)),
            ]
            out_specs = pl.BlockSpec((tm, tn), lambda i, j: (i, j))
        else:
            grid = (gn, gm)                # j outer: weight tile resident, x streams
            in_specs = [
                pl.BlockSpec((tm, d_visual), lambda j, i: (i, 0)),
                pl.BlockSpec((d_visual, tn), lambda j, i: (0, j)),
                pl.BlockSpec((1, tn), lambda j, i: (0, j)),
            ]
            out_specs = pl.BlockSpec((tm, tn), lambda j, i: (i, j))
        dim_sem = ("parallel", "parallel")
        kernel = _embed_kernel
    else:  # ksplit
        grid = (pl.cdiv(m, tm), pl.cdiv(n_pad, tn), pl.cdiv(k_pad, tk))
        in_specs = [
            pl.BlockSpec((tm, tk), lambda i, j, k: (i, k)),
            pl.BlockSpec((tk, tn), lambda i, j, k: (k, j)),
            pl.BlockSpec((1, tn), lambda i, j, k: (0, j)),
        ]
        out_specs = pl.BlockSpec((tm, tn), lambda i, j, k: (i, j))
        scratch = [pltpu.VMEM((tm, tn), jnp.float32)]
        dim_sem = ("parallel", "parallel", "arbitrary")
        kernel = _embed_kernel_ksplit

    cost = pl.CostEstimate(
        flops=2 * m * d_visual * n_pad,
        transcendentals=0,
        bytes_accessed=(x_item * m * d_visual          # activations read once
                        + w_item * d_visual * n_pad    # weight read once (resident)
                        + 4 * n_pad
                        + o_item * m * d_model),
    )

    out = pl.pallas_call(
        kernel,
        out_shape=jax.ShapeDtypeStruct((m, d_model), out_dtype),
        grid_spec=pltpu.PrefetchScalarGridSpec(
            num_scalar_prefetch=0,
            grid=grid,
            in_specs=in_specs,
            out_specs=out_specs,
            scratch_shapes=scratch,
        ),
        compiler_params=pltpu.CompilerParams(
            dimension_semantics=dim_sem,
            vmem_limit_bytes=vmem_limit_bytes,
        ),
        cost_estimate=cost,
    )(x2d, weight, b2d)

    return out.reshape(*lead_shape, d_model)


if __name__ == "__main__":
    key = jax.random.PRNGKey(0)
    k_x, k_w, k_b, k_x2, k_w2, k_b2, k_w3, k_b3 = jax.random.split(key, 8)

    # ---- 1) Default path (weight VMEM-resident), exact f32 -----------------
    batch, seq, d_visual, d_model = 2, 8, 32, 64
    inputs = jax.random.normal(k_x, (batch, seq, d_visual), dtype=jnp.float32)
    weight = (jax.random.normal(k_w, (d_visual, d_model), dtype=jnp.float32)
              * (1.0 / jnp.sqrt(d_visual)))
    bias = jax.random.normal(k_b, (d_model,), dtype=jnp.float32) * 0.01

    out = jax.block_until_ready(visual_embedding(inputs, weight, bias))
    ref = jnp.maximum(inputs @ weight + bias, 0.0)
    assert out.shape == (batch, seq, d_model)
    assert jnp.allclose(out, ref, atol=1e-5, rtol=1e-5)

    # ---- 2) bf16 MXU operands (wrapper-side cast), looser tolerance --------
    out_bf16 = jax.block_until_ready(
        visual_embedding(inputs, weight, bias, matmul_dtype=jnp.bfloat16))
    assert out_bf16.shape == (batch, seq, d_model)
    assert jnp.allclose(out_bf16, ref, atol=5e-2, rtol=5e-2)

    # ---- 3) K-split accumulator fallback (forced via tk) -------------------
    d_visual2, d_model2 = 256, 128
    inputs2 = jax.random.normal(k_x2, (batch, seq, d_visual2), dtype=jnp.float32)
    weight2 = (jax.random.normal(k_w2, (d_visual2, d_model2), dtype=jnp.float32)
               * (1.0 / jnp.sqrt(d_visual2)))
    bias2 = jax.random.normal(k_b2, (d_model2,), dtype=jnp.float32) * 0.01
    out2 = jax.block_until_ready(
        visual_embedding(inputs2, weight2, bias2, tk=128))
    ref2 = jnp.maximum(inputs2 @ weight2 + bias2, 0.0)
    assert out2.shape == (batch, seq, d_model2)
    assert jnp.allclose(out2, ref2, atol=1e-4, rtol=1e-4)

    # ---- 4) Streaming (non-resident) path, forced, multiple N blocks -------
    d_model3 = 256
    weight3 = (jax.random.normal(k_w3, (d_visual, d_model3), dtype=jnp.float32)
               * (1.0 / jnp.sqrt(d_visual)))
    bias3 = jax.random.normal(k_b3, (d_model3,), dtype=jnp.float32) * 0.01
    out3 = jax.block_until_ready(
        visual_embedding(inputs, weight3, bias3, force_mode="stream", tn=128))
    ref3 = jnp.maximum(inputs @ weight3 + bias3, 0.0)
    assert out3.shape == (batch, seq, d_model3)
    assert jnp.allclose(out3, ref3, atol=1e-5, rtol=1e-5)

    print("KERNEL_OK")
</pallas_src>

<mosaic_0001>
module attributes {stable_mosaic.version = 11 : i64} {
  func.func @_embed_kernel(%arg0: i32, %arg1: memref<16x32xf32, #tpu.memory_space<vmem>>, %arg2: memref<32x128xf32, #tpu.memory_space<vmem>>, %arg3: memref<1x128xf32, #tpu.memory_space<vmem>>, %arg4: memref<16x128xf32, #tpu.memory_space<vmem>>) attributes {dimension_semantics = [#tpu.dimension_semantics<parallel>], iteration_bounds = array<i64: 1>, scalar_prefetch = 0 : i64, scratch_operands = 0 : i64, tpu.core_type = #tpu.core_type<tc>, window_params = [{transform_indices = @transform_0, window_bounds = array<i64: 16, 32>}, {pipeline_mode = #tpu.pipeline_mode<synchronous>, transform_indices = @transform_1, window_bounds = array<i64: 32, 128>}, {pipeline_mode = #tpu.pipeline_mode<synchronous>, transform_indices = @transform_2, window_bounds = array<i64: 1, 128>}, {transform_indices = @transform_3, window_bounds = array<i64: 16, 128>}]} {
    %c0 = arith.constant 0 : index
    %c0_0 = arith.constant 0 : index
    %0 = vector.load %arg1[%c0, %c0_0] : memref<16x32xf32, #tpu.memory_space<vmem>>, vector<16x32xf32>
    %c0_1 = arith.constant 0 : index
    %c0_2 = arith.constant 0 : index
    %1 = vector.load %arg2[%c0_1, %c0_2] : memref<32x128xf32, #tpu.memory_space<vmem>>, vector<32x128xf32>
    %cst = arith.constant dense<0.000000e+00> : vector<16x128xf32>
    %2 = tpu.matmul %0, %1, %cst {dimension_numbers = #tpu.dot_dimension_numbers<[1], [0], [0], [1], [0, 0, 1, 1], [], []>} : vector<16x32xf32>, vector<32x128xf32>, vector<16x128xf32> -> vector<16x128xf32>
    %c0_3 = arith.constant 0 : index
    %c0_4 = arith.constant 0 : index
    %3 = vector.load %arg3[%c0_3, %c0_4] : memref<1x128xf32, #tpu.memory_space<vmem>>, vector<1x128xf32>
    %4 = vector.broadcast %3 : vector<1x128xf32> to vector<16x128xf32>
    %5 = arith.addf %2, %4 : vector<16x128xf32>
    %cst_5 = arith.constant 0.000000e+00 : f32
    %6 = vector.broadcast %cst_5 : f32 to vector<16x128xf32>
    %7 = arith.maximumf %5, %6 : vector<16x128xf32>
    %c0_6 = arith.constant 0 : index
    %c0_7 = arith.constant 0 : index
    %8 = vector.load %arg4[%c0_6, %c0_7] : memref<16x128xf32, #tpu.memory_space<vmem>>, vector<16x128xf32>
    tpu.vector_store %arg4[%c0_6, %c0_7], %7 {strides = array<i32>} : memref<16x128xf32, #tpu.memory_space<vmem>>, vector<16x128xf32>,
    return
  }
  func.func @transform_0(%arg0: i32) -> (i32, i32) {
    %c0_i32 = arith.constant 0 : i32
    %c0_i32_0 = arith.constant 0 : i32
    return %arg0, %c0_i32 : i32, i32
  }
  func.func @transform_1(%arg0: i32) -> (i32, i32) {
    %c0_i32 = arith.constant 0 : i32
    %c0_i32_0 = arith.constant 0 : i32
    %c0_i32_1 = arith.constant 0 : i32
    return %c0_i32, %c0_i32_0 : i32, i32
  }
  func.func @transform_2(%arg0: i32) -> (i32, i32) {
    %c0_i32 = arith.constant 0 : i32
    %c0_i32_0 = arith.constant 0 : i32
    %c0_i32_1 = arith.constant 0 : i32
    return %c0_i32, %c0_i32_0 : i32, i32
  }
  func.func @transform_3(%arg0: i32) -> (i32, i32) {
    %c0_i32 = arith.constant 0 : i32
    %c0_i32_0 = arith.constant 0 : i32
    return %arg0, %c0_i32 : i32, i32
  }
}

</mosaic_0001>

<llo_original>
// kernel: tpu_custom_call.1
$region0: #{tpu_custom_call.1}
  #allocation0 [shape = 'u32[]', space=smem, size = 0x4, offset = 0x4, fixed_abs, tag = 'smem constant byte address 0x4 - core index']
  #allocation1 [shape = 'u32[72,128]{1,0:T(1,128)}', space=vmem, size = 0x9000, scoped, tag = 'internal scratch']
  %s0 = inlined_call_operand.hbm [shape: f32[16,32], index: 0, kind: input, shape index: {}]
  %s1 = inlined_call_operand.hbm [shape: f32[32,128], index: 1, kind: input, shape index: {}]
  %s2 = inlined_call_operand.vmem [shape: f32[1,128], index: 2, kind: input, shape index: {}]
  %s3 = inlined_call_operand.hbm [shape: f32[16,64], index: 3, kind: output, shape index: {}]
  %s4 = sld [smem:[#allocation0]]
  $region30: #{tpu_custom_call.1} parent=0
    _
  %s6 = ssub.s32 1, %s4
  %s7 = scalar_select 0, %s6, %s4
  $region1: #{tpu_custom_call.1} parent=0
    #allocation2 [shape = 'u8[8192]{0}', space=vmem, size = 0x2000, scoped, tag = 'input window, operand 0, single buffered']
    #allocation3 [shape = 's32[1]{0}', space=sflag, size = 0x4, scoped, tag = 'scoped memory for tpu_custom_call.1']
    #allocation4 [shape = 's32[1]{0}', space=sflag, size = 0x4, scoped, tag = 'scoped memory for tpu_custom_call.1']
    #allocation5 [shape = 'u8[16384]{0}', space=vmem, size = 0x4000, scoped, tag = 'input window, operand 1, single buffered']
    #allocation6 [shape = 's32[1]{0}', space=sflag, size = 0x4, scoped, tag = 'scoped memory for tpu_custom_call.1']
    #allocation7 [shape = 'u8[8192]{0}', space=vmem, size = 0x2000, scoped, tag = 'output window, operand 0, single buffered']
    %8 = vsyncpa [#allocation3], 0
    %9 = vsyncpa [#allocation6], 0
    %10 = vsyncpa [#allocation4], 0
    // Predicated region
    $region2: #{tpu_custom_call.1} parent=1 // pred_check
      _
    $region3: #{tpu_custom_call.1} parent=1 // pred_check_branch
      %12 = sbr.rel (0) target = $region5
    $region4: #{tpu_custom_call.1} parent=1 // pred_region
      %14 = vsyncadd [#allocation3], 0
      %s15 = sshll.u32 %s0, 4
      %s16 = int_to_ptr.hbm [resolvable:$true] %s15
      %s17 = sshll.u32 [#allocation2], 4
      %s18 = int_to_ptr.vmem [resolvable:$true] %s17
      %23 = dma.hbm_to_vmem [thread:$0]  %s16, 256, %s18, [#allocation3], 128, 128, 8
    $region5: #{tpu_custom_call.1} parent=1 // pred_fallthru
      _
    // Predicated region
    $region6: #{tpu_custom_call.1} parent=1 // pred_check
      _
    $region7: #{tpu_custom_call.1} parent=1 // pred_check_branch
      %25 = sbr.rel (0) target = $region9
    $region8: #{tpu_custom_call.1} parent=1 // pred_region
      %27 = vsyncadd [#allocation6], 0
      %s28 = sshll.u32 %s1, 4
      %s29 = int_to_ptr.hbm [resolvable:$true] %s28
      %s30 = sshll.u32 [#allocation5], 4
      %s31 = int_to_ptr.vmem [resolvable:$true] %s30
      %36 = dma.hbm_to_vmem [thread:$0]  %s29, 512, %s31, [#allocation6], 128, 128, 8
    $region9: #{tpu_custom_call.1} parent=1 // pred_fallthru
      _
    // Predicated region
    $region10: #{tpu_custom_call.1} parent=1 // pred_check
      _
    $region11: #{tpu_custom_call.1} parent=1 // pred_check_branch
      %38 = sbr.rel (0) target = $region13
    $region12: #{tpu_custom_call.1} parent=1 // pred_region
      _
    $region13: #{tpu_custom_call.1} parent=1 // pred_fallthru
      _
    // Predicated region
    $region14: #{tpu_custom_call.1} parent=1 // pred_check
      _
    $region15: #{tpu_custom_call.1} parent=1 // pred_check_branch
      %40 = sbr.rel (0) target = $region17
    $region16: #{tpu_custom_call.1} parent=1 // pred_region
      %42 = dma.done [#allocation3], 256
    $region17: #{tpu_custom_call.1} parent=1 // pred_fallthru
      _
    // Predicated region
    $region18: #{tpu_custom_call.1} parent=1 // pred_check
      _
    $region19: #{tpu_custom_call.1} parent=1 // pred_check_branch
      %44 = sbr.rel (0) target = $region21
    $region20: #{tpu_custom_call.1} parent=1 // pred_region
      %46 = dma.done [#allocation6], 512
    $region21: #{tpu_custom_call.1} parent=1 // pred_fallthru
      _
    %v47 = vld [vmem:[#allocation2] sm:$0xff]
    %v48 = vld [vmem:[#allocation2 + $0x8] sm:$0xff]
    %v49 = vld [vmem:[#allocation5] sm:$0xff]
    %v50 = vld [vmem:[#allocation5 + $0x8] sm:$0xff]
    %v51 = vld [vmem:[#allocation5 + $0x10] sm:$0xff]
    %v52 = vld [vmem:[#allocation5 + $0x18] sm:$0xff]
    %v53 = vld [vmem:[%s2] sm:$0x1]
    %v55 = vperm.slane %v53, 0
    %vm57 = vcmask 261120
    %v59 = vsel %vm57, %v47, 0
    %v62 = vsel %vm57, %v48, 0
    %64 = vmatpush.msra.mxu0 0.0
    %65 = vmatpush.msra.mxu0 0.0
    %66 = vmatpush.msra.mxu0 0.0
    %67 = vmatpush.msra.mxu0 0.0
    %68 = vmatpush.msra.mxu0 0.0
    %69 = vmatpush.msra.mxu0 0.0
    %70 = vmatpush.msra.mxu0 0.0
    %71 = vmatpush.msra.mxu0 0.0
    %72 = vmatpush.msra.mxu0 0.0
    %73 = vmatpush.msra.mxu0 0.0
    %74 = vmatpush.msra.mxu0 0.0
    %75 = vmatpush.msra.mxu0 0.0
    %76 = vmatpush.msra.mxu0 %v52
    %77 = vmatpush.msra.mxu0 %v51
    %78 = vmatpush.msra.mxu0 %v50
    %79 = vmatpush.msra.mxu0 %v49
    %80 = vmatmul.f32.gmra.mxu0 %v59
    %v81 = vpop.f32.mrf.mxu0
    %v82 = vadd.f32 %v55, %v81
    %83 = vmatmul.f32.gmra.mxu0 %v62
    %v84 = vpop.f32.mrf.mxu0
    %v85 = vadd.f32 %v55, %v84
    %86 = vdwg.mxu0
    %v87 = vmax.f32 %v82, 0.0
    %v88 = vmax.f32 %v85, 0.0
    %89 = vst [vmem:[#allocation7] sm:$0xff] %v87
    %90 = vst [vmem:[#allocation7 + $0x8] sm:$0xff] %v88
    // Predicated region
    $region22: #{tpu_custom_call.1} parent=1 // pred_check
      _
    $region23: #{tpu_custom_call.1} parent=1 // pred_check_branch
      %92 = sbr.rel (0) target = $region25
    $region24: #{tpu_custom_call.1} parent=1 // pred_region
      %94 = vsyncadd [#allocation4], 0
      %s95 = sshll.u32 [#allocation7], 4
      %s96 = int_to_ptr.vmem [resolvable:$true] %s95
      %s97 = sshll.u32 %s3, 4
      %s98 = int_to_ptr.hbm [resolvable:$true] %s97
      %103 = dma.vmem_to_hbm [thread:$0]  %s96, 256, %s98, [#allocation4], 128, 128, 8
    $region25: #{tpu_custom_call.1} parent=1 // pred_fallthru
      _
    // Predicated region
    $region26: #{tpu_custom_call.1} parent=1 // pred_check
      _
    $region27: #{tpu_custom_call.1} parent=1 // pred_check_branch
      %105 = sbr.rel (0) target = $region29
    $region28: #{tpu_custom_call.1} parent=1 // pred_region
      %107 = dma.done [#allocation4], 256
    $region29: #{tpu_custom_call.1} parent=1 // pred_fallthru
      _
    %108 = vsyncpa [#allocation3], 1
    %109 = vsyncpa [#allocation6], 1
    %110 = vsyncpa [#allocation4], 1

</llo_original>
